<compile_context>
chip_gen: v5e
topology: v5e:2x2
jax: 0.10.0
libtpu: 0.0.40
codegen_flags: <defaults>
</compile_context>

<pallas_src>
import functools
import math

import jax
import jax.numpy as jnp
from jax import lax
from jax.experimental import pallas as pl
from jax.experimental.pallas import tpu as pltpu


def _round_up(x, m):
    return ((x + m - 1) // m) * m


def _vmem_capacity_bytes():
    """Per-generation VMEM capacity (falls back conservatively)."""
    try:
        info = pltpu.get_tpu_info()
        cap = int(getattr(info, "vmem_capacity_bytes", 0) or 0)
        if cap > 0:
            return cap
    except Exception:
        pass
    # Conservative fallback (v7x has only 64 MiB per TensorCore).
    return 64 << 20


def _pad_cast(x, shape, dtype):
    """Cast + zero-pad to `shape`; no-op if already in the target layout."""
    if tuple(x.shape) == tuple(shape) and x.dtype == jnp.dtype(dtype):
        return x
    x = x.astype(dtype)
    pad = [(0, s - d) for s, d in zip(shape, x.shape)]
    return jnp.pad(x, pad)


def _select_tiles(N, f_r, f_out_p, w_bytes, isz, budget, row_tile=None, k_tile=None):
    """Pick (tm, tk, vmem_need).

    Prefers the largest row tile (1024/512/256/128) whose padding waste is
    small and that fits the VMEM budget with the full contraction resident
    ("single-K"); otherwise falls back to K-tiling so the working set is
    bounded independently of N (needed on v7x's 64 MiB at large N).
    """
    n128 = _round_up(max(N, 1), 128)

    if row_tile is not None:
        cands = [max(128, min(_round_up(row_tile, 128), n128))]
    else:
        cands = [t for t in (1024, 512, 256, 128) if t <= n128] or [128]

    def need_single(tm):
        # A tile + output tile double-buffered; R / W / bias constant index
        # maps -> single buffer.
        return (2 * tm * n128 * isz + n128 * f_r * isz
                + 2 * tm * f_out_p * 4 + w_bytes)

    def need_multi(tm, tk):
        # A and R tiles both stream over K -> double buffered; plus f32 acc.
        return (2 * tm * tk * isz + 2 * tk * f_r * isz
                + 2 * tm * f_out_p * 4 + tm * f_r * 4 + w_bytes)

    def waste_ok(tm):
        return (_round_up(N, tm) <= 1.15 * n128) or tm == cands[-1]

    if k_tile is not None:
        tk = max(128, min(_round_up(k_tile, 128), n128))
        for tm in cands:
            need = need_multi(tm, tk)
            if need <= budget or tm == cands[-1]:
                return tm, tk, need

    # 1) single-K: resident right operand, largest fitting row tile.
    for tm in cands:
        if not waste_ok(tm):
            continue
        need = need_single(tm)
        if need <= budget:
            return tm, n128, need

    # 2) K-tiled accumulator path.
    for tm in cands:
        if not waste_ok(tm):
            continue
        for tk in (2048, 1024, 512, 256, 128):
            if tk > n128:
                continue
            need = need_multi(tm, tk)
            if need <= budget:
                return tm, tk, need

    # Last resort: smallest tiles (may exceed budget; let Mosaic decide).
    tm, tk = cands[-1], 128
    return tm, tk, need_multi(tm, tk)


def _gcn_kernel(*refs, project, multi_k):
    """out_tile = ELU(A_tile @ R (@ W) + b).

    Ref layout:
      multi_k : (a, r, [w], b, o, acc)
      single-K: (a, r, [w], b, o)
    """
    if multi_k:
        acc_ref = refs[-1]
        refs = refs[:-1]
    if project:
        a_ref, r_ref, w_ref, b_ref, o_ref = refs
    else:
        a_ref, r_ref, b_ref, o_ref = refs
        w_ref = None

    def epilogue(z):
        h = z
        if project:
            # Small f32 projection Z @ W^T (W^T resident in VMEM).
            h = jnp.dot(h, w_ref[...], preferred_element_type=jnp.float32)
        h = h + b_ref[...]                      # bias broadcast over rows (f32)
        # ELU(alpha=1): x if x > 0 else exp(x) - 1  (exp runs on the EUP slot).
        o_ref[...] = jnp.where(h > 0.0, h, jnp.exp(h) - 1.0).astype(o_ref.dtype)

    if multi_k:
        k = pl.program_id(1)

        @pl.when(k == 0)
        def _():
            acc_ref[...] = jnp.zeros_like(acc_ref)

        acc_ref[...] += jnp.dot(a_ref[...], r_ref[...],
                                preferred_element_type=jnp.float32)

        @pl.when(k == pl.num_programs(1) - 1)
        def _():
            epilogue(acc_ref[...])
    else:
        epilogue(jnp.dot(a_ref[...], r_ref[...],
                         preferred_element_type=jnp.float32))


def gcn_layer(A, X, W, b, *, row_tile=None, k_tile=None, use_bf16=True):
    """GCN layer forward:  ELU((A @ X) @ W^T + b).

    A: [N, N] dense adjacency, X: [N, F_in], W: [F_out, F_in] (torch Linear
    layout), b: [F_out].  Returns [N, F_out] float32.
    """
    N = A.shape[0]
    F_in = X.shape[-1]
    F_out = W.shape[0]

    LANE = 128
    in_dtype = jnp.bfloat16 if use_bf16 else jnp.float32
    isz = jnp.dtype(in_dtype).itemsize

    f_in_p = _round_up(F_in, LANE)
    f_out_p = _round_up(F_out, LANE)

    # Static matmul-order choice: project first (hoisted to the wrapper) when
    # it shrinks the operand of the dominant A matmul.
    xw_first = F_out < F_in
    project = not xw_first
    f_r = f_out_p if xw_first else f_in_p
    w_bytes = (f_in_p * f_out_p * 4 if project else 0) + f_out_p * 4

    budget = int(_vmem_capacity_bytes() * 0.85)     # headroom for Mosaic scratch
    tm, tk, vmem_need = _select_tiles(N, f_r, f_out_p, w_bytes, isz, budget,
                                      row_tile=row_tile, k_tile=k_tile)

    n_rows_p = _round_up(N, tm)
    n_k_p = _round_up(N, tk)
    grid_rows = n_rows_p // tm
    grid_k = n_k_p // tk
    multi_k = grid_k > 1

    # A is the dominant N^2 HBM stream: cast+pad once (skipped when the caller
    # already passes a padded bf16 adjacency).
    # TODO(synk): in a multi-layer GCN, prepare the padded bf16 adjacency once
    # and reuse it across layers instead of re-padding per call.
    a_p = _pad_cast(A, (n_rows_p, n_k_p), in_dtype)

    if xw_first:
        # Hoisted projection: computed once in f32 (HIGHEST precision), cast to
        # bf16 once; the kernel only does A_tile @ P.
        P = jnp.dot(X.astype(jnp.float32), W.astype(jnp.float32).T,
                    precision=lax.Precision.HIGHEST)
        r_p = _pad_cast(P, (n_k_p, f_out_p), in_dtype)
    else:
        r_p = _pad_cast(X, (n_k_p, f_in_p), in_dtype)

    b_p = _pad_cast(b.reshape(1, F_out), (1, f_out_p), jnp.float32)

    operands = [a_p, r_p]
    in_specs = [
        pl.BlockSpec((tm, tk), lambda i, k: (i, k)),        # A: streamed tiles
        pl.BlockSpec((tk, f_r), lambda i, k: (k, 0)),       # R: X or hoisted P
    ]
    if project:
        w_p = _pad_cast(W.T, (f_in_p, f_out_p), jnp.float32)
        operands.append(w_p)
        in_specs.append(pl.BlockSpec((f_in_p, f_out_p), lambda i, k: (0, 0)))
    operands.append(b_p)
    in_specs.append(pl.BlockSpec((1, f_out_p), lambda i, k: (0, 0)))

    scratch_shapes = []
    if multi_k:
        scratch_shapes.append(pltpu.VMEM((tm, f_r), jnp.float32))

    # Cost hint for XLA's scheduler around the custom call.
    flops = 2 * n_rows_p * n_k_p * f_r
    if project:
        flops += 2 * n_rows_p * f_in_p * f_out_p
    r_passes = grid_rows if multi_k else 1
    bytes_accessed = (n_rows_p * n_k_p * isz
                      + r_passes * n_k_p * f_r * isz
                      + n_rows_p * f_out_p * 4
                      + w_bytes)
    cost = pl.CostEstimate(flops=int(flops),
                           transcendentals=int(n_rows_p * f_out_p),
                           bytes_accessed=int(bytes_accessed))

    vmem_limit = int(min(max(vmem_need + (8 << 20), 32 << 20), budget))

    out_p = pl.pallas_call(
        functools.partial(_gcn_kernel, project=project, multi_k=multi_k),
        out_shape=jax.ShapeDtypeStruct((n_rows_p, f_out_p), jnp.float32),
        grid_spec=pltpu.PrefetchScalarGridSpec(
            num_scalar_prefetch=0,
            grid=(grid_rows, grid_k),
            in_specs=in_specs,
            out_specs=pl.BlockSpec((tm, f_out_p), lambda i, k: (i, 0)),
            scratch_shapes=scratch_shapes,
        ),
        compiler_params=pltpu.CompilerParams(
            dimension_semantics=("parallel", "arbitrary"),
            vmem_limit_bytes=vmem_limit,
        ),
        cost_estimate=cost,
    )(*operands)

    return out_p[:N, :F_out]


if __name__ == "__main__":
    import numpy as np

    def elu(x):
        return np.where(x > 0, x, np.expm1(x))

    def reference(A, X, W, b, xw_first):
        # Mirror the kernel's bf16 MXU inputs: pre-round the bf16-cast operands.
        A64 = np.asarray(jnp.asarray(A).astype(jnp.bfloat16).astype(jnp.float32),
                         np.float64)
        W64 = np.asarray(W, np.float64)
        b64 = np.asarray(b, np.float64)
        if xw_first:
            P = np.asarray(X, np.float32) @ np.asarray(W, np.float32).T
            P64 = np.asarray(jnp.asarray(P).astype(jnp.bfloat16).astype(jnp.float32),
                             np.float64)
            h = A64 @ P64 + b64
        else:
            X64 = np.asarray(jnp.asarray(X).astype(jnp.bfloat16).astype(jnp.float32),
                             np.float64)
            h = (A64 @ X64) @ W64.T + b64
        return elu(h)

    def make_case(key, n, f_in, f_out):
        k_a, k_x, k_w, k_b = jax.random.split(key, 4)
        A = jax.random.normal(k_a, (n, n), dtype=jnp.float32)
        X = jax.random.normal(k_x, (n, f_in), dtype=jnp.float32)
        bound = 1.0 / math.sqrt(f_in)
        W = jax.random.uniform(k_w, (f_out, f_in), minval=-bound, maxval=bound,
                               dtype=jnp.float32)
        b = jax.random.uniform(k_b, (f_out,), minval=-bound, maxval=bound,
                               dtype=jnp.float32)
        return A, X, W, b

    key1, key2 = jax.random.split(jax.random.PRNGKey(0))

    # Case 1: the original module's small config (aggregate-first path).
    N, F_in, F_out = 8, 16, 32
    A, X, W, b = make_case(key1, N, F_in, F_out)
    out = jax.block_until_ready(gcn_layer(A, X, W, b))
    assert out.shape == (N, F_out)
    np.testing.assert_allclose(np.asarray(out, np.float64),
                               reference(A, X, W, b, xw_first=False),
                               atol=5e-2, rtol=5e-2)

    # Case 2: F_in > F_out exercises the hoisted-projection path and a
    # multi-row-tile grid with ragged N.
    N2, F_in2, F_out2 = 300, 96, 32
    A2, X2, W2, b2 = make_case(key2, N2, F_in2, F_out2)
    out2 = jax.block_until_ready(gcn_layer(A2, X2, W2, b2))
    ref2 = reference(A2, X2, W2, b2, xw_first=True)
    np.testing.assert_allclose(np.asarray(out2, np.float64), ref2,
                               atol=5e-2, rtol=5e-2)

    # Case 3: force the K-tiled accumulator path (auto-selected when the
    # working set would exceed the per-generation VMEM budget, e.g. v7x).
    out3 = jax.block_until_ready(
        gcn_layer(A2, X2, W2, b2, row_tile=128, k_tile=128))
    np.testing.assert_allclose(np.asarray(out3, np.float64), ref2,
                               atol=5e-2, rtol=5e-2)

    print("KERNEL_OK")
</pallas_src>

<mosaic_0001>
module attributes {stable_mosaic.version = 11 : i64} {
  func.func @_gcn_kernel(%arg0: i32, %arg1: i32, %arg2: memref<128x128xbf16, #tpu.memory_space<vmem>>, %arg3: memref<128x128xbf16, #tpu.memory_space<vmem>>, %arg4: memref<128x128xf32, #tpu.memory_space<vmem>>, %arg5: memref<1x128xf32, #tpu.memory_space<vmem>>, %arg6: memref<128x128xf32, #tpu.memory_space<vmem>>) attributes {dimension_semantics = [#tpu.dimension_semantics<parallel>, #tpu.dimension_semantics<arbitrary>], iteration_bounds = array<i64: 1, 1>, scalar_prefetch = 0 : i64, scratch_operands = 0 : i64, tpu.core_type = #tpu.core_type<tc>, window_params = [{transform_indices = @transform_0, window_bounds = array<i64: 128, 128>}, {transform_indices = @transform_1, window_bounds = array<i64: 128, 128>}, {pipeline_mode = #tpu.pipeline_mode<synchronous>, transform_indices = @transform_2, window_bounds = array<i64: 128, 128>}, {pipeline_mode = #tpu.pipeline_mode<synchronous>, transform_indices = @transform_3, window_bounds = array<i64: 1, 128>}, {transform_indices = @transform_4, window_bounds = array<i64: 128, 128>}]} {
    %c0 = arith.constant 0 : index
    %c0_0 = arith.constant 0 : index
    %0 = vector.load %arg2[%c0, %c0_0] : memref<128x128xbf16, #tpu.memory_space<vmem>>, vector<128x128xbf16>
    %c0_1 = arith.constant 0 : index
    %c0_2 = arith.constant 0 : index
    %1 = vector.load %arg3[%c0_1, %c0_2] : memref<128x128xbf16, #tpu.memory_space<vmem>>, vector<128x128xbf16>
    %cst = arith.constant dense<0.000000e+00> : vector<128x128xf32>
    %2 = tpu.matmul %0, %1, %cst {dimension_numbers = #tpu.dot_dimension_numbers<[1], [0], [0], [1], [0, 0, 1, 1], [], []>} : vector<128x128xbf16>, vector<128x128xbf16>, vector<128x128xf32> -> vector<128x128xf32>
    %c0_3 = arith.constant 0 : index
    %c0_4 = arith.constant 0 : index
    %3 = vector.load %arg4[%c0_3, %c0_4] : memref<128x128xf32, #tpu.memory_space<vmem>>, vector<128x128xf32>
    %cst_5 = arith.constant dense<0.000000e+00> : vector<128x128xf32>
    %4 = tpu.matmul %2, %3, %cst_5 {dimension_numbers = #tpu.dot_dimension_numbers<[1], [0], [0], [1], [0, 0, 1, 1], [], []>} : vector<128x128xf32>, vector<128x128xf32>, vector<128x128xf32> -> vector<128x128xf32>
    %c0_6 = arith.constant 0 : index
    %c0_7 = arith.constant 0 : index
    %5 = vector.load %arg5[%c0_6, %c0_7] : memref<1x128xf32, #tpu.memory_space<vmem>>, vector<1x128xf32>
    %6 = vector.broadcast %5 : vector<1x128xf32> to vector<128x128xf32>
    %7 = arith.addf %4, %6 : vector<128x128xf32>
    %cst_8 = arith.constant 0.000000e+00 : f32
    %8 = vector.broadcast %cst_8 : f32 to vector<128x128xf32>
    %9 = arith.cmpf ogt, %7, %8 : vector<128x128xf32>
    %10 = math.exp %7 : vector<128x128xf32>
    %cst_9 = arith.constant 1.000000e+00 : f32
    %11 = vector.broadcast %cst_9 : f32 to vector<128x128xf32>
    %12 = arith.subf %10, %11 : vector<128x128xf32>
    %13 = arith.select %9, %7, %12 : vector<128x128xi1>, vector<128x128xf32>
    %c0_10 = arith.constant 0 : index
    %c0_11 = arith.constant 0 : index
    %14 = vector.load %arg6[%c0_10, %c0_11] : memref<128x128xf32, #tpu.memory_space<vmem>>, vector<128x128xf32>
    tpu.vector_store %arg6[%c0_10, %c0_11], %13 {strides = array<i32>} : memref<128x128xf32, #tpu.memory_space<vmem>>, vector<128x128xf32>,
    return
  }
  func.func @transform_0(%arg0: i32, %arg1: i32) -> (i32, i32) {
    %c0_i32 = arith.constant 0 : i32
    return %arg0, %arg1 : i32, i32
  }
  func.func @transform_1(%arg0: i32, %arg1: i32) -> (i32, i32) {
    %c0_i32 = arith.constant 0 : i32
    %c0_i32_0 = arith.constant 0 : i32
    return %arg1, %c0_i32 : i32, i32
  }
  func.func @transform_2(%arg0: i32, %arg1: i32) -> (i32, i32) {
    %c0_i32 = arith.constant 0 : i32
    %c0_i32_0 = arith.constant 0 : i32
    %c0_i32_1 = arith.constant 0 : i32
    return %c0_i32, %c0_i32_0 : i32, i32
  }
  func.func @transform_3(%arg0: i32, %arg1: i32) -> (i32, i32) {
    %c0_i32 = arith.constant 0 : i32
    %c0_i32_0 = arith.constant 0 : i32
    %c0_i32_1 = arith.constant 0 : i32
    return %c0_i32, %c0_i32_0 : i32, i32
  }
  func.func @transform_4(%arg0: i32, %arg1: i32) -> (i32, i32) {
    %c0_i32 = arith.constant 0 : i32
    %c0_i32_0 = arith.constant 0 : i32
    return %arg0, %c0_i32 : i32, i32
  }
}

</mosaic_0001>

<llo_original>
// kernel: tpu_custom_call.1
$region0: #{tpu_custom_call.1}
  #allocation0 [shape = 'u32[]', space=smem, size = 0x4, offset = 0x4, fixed_abs, tag = 'smem constant byte address 0x4 - core index']
  #allocation1 [shape = 'u32[72,128]{1,0:T(1,128)}', space=vmem, size = 0x9000, scoped, tag = 'internal scratch']
  %s0 = inlined_call_operand.hbm [shape: bf16[128,128], index: 0, kind: input, shape index: {}]
  %s1 = inlined_call_operand.hbm [shape: bf16[128,128], index: 1, kind: input, shape index: {}]
  %s2 = inlined_call_operand.hbm [shape: f32[128,128], index: 2, kind: input, shape index: {}]
  %s3 = inlined_call_operand.vmem [shape: f32[1,128], index: 3, kind: input, shape index: {}]
  %s4 = inlined_call_operand.hbm [shape: f32[128,128], index: 4, kind: output, shape index: {}]
  %s5 = sld [smem:[#allocation0]]
  $region38: #{tpu_custom_call.1} parent=0
    _
  %s7 = ssub.s32 1, %s5
  %s8 = scalar_select 0, %s7, %s5
  $region1: #{tpu_custom_call.1} parent=0
    #allocation2 [shape = 'u8[32768]{0}', space=vmem, size = 0x8000, scoped, tag = 'input window, operand 0, single buffered']
    #allocation3 [shape = 's32[1]{0}', space=sflag, size = 0x4, scoped, tag = 'scoped memory for tpu_custom_call.1']
    #allocation4 [shape = 's32[1]{0}', space=sflag, size = 0x4, scoped, tag = 'scoped memory for tpu_custom_call.1']
    #allocation5 [shape = 'u8[32768]{0}', space=vmem, size = 0x8000, scoped, tag = 'input window, operand 1, single buffered']
    #allocation6 [shape = 's32[1]{0}', space=sflag, size = 0x4, scoped, tag = 'scoped memory for tpu_custom_call.1']
    #allocation7 [shape = 'u8[65536]{0}', space=vmem, size = 0x10000, scoped, tag = 'input window, operand 2, single buffered']
    #allocation8 [shape = 'u8[65536]{0}', space=vmem, size = 0x10000, scoped, tag = 'output window, operand 0, single buffered']
    %9 = vsyncpa [#allocation3], 0
    %10 = vsyncpa [#allocation6], 0
    %11 = vsyncpa [#allocation4], 0
    // Predicated region
    $region2: #{tpu_custom_call.1} parent=1 // pred_check
      _
    $region3: #{tpu_custom_call.1} parent=1 // pred_check_branch
      %13 = sbr.rel (0) target = $region5
    $region4: #{tpu_custom_call.1} parent=1 // pred_region
      %15 = vsyncadd [#allocation3], 0
      %s16 = sshll.u32 %s0, 4
      %s17 = int_to_ptr.hbm [resolvable:$true] %s16
      %s18 = sshll.u32 [#allocation2], 4
      %s19 = int_to_ptr.vmem [resolvable:$true] %s18
      %24 = dma.hbm_to_vmem [thread:$0]  %s17, 1024, %s19, [#allocation3], 64, 64, 4
    $region5: #{tpu_custom_call.1} parent=1 // pred_fallthru
      _
    // Predicated region
    $region6: #{tpu_custom_call.1} parent=1 // pred_check
      _
    $region7: #{tpu_custom_call.1} parent=1 // pred_check_branch
      %26 = sbr.rel (0) target = $region9
    $region8: #{tpu_custom_call.1} parent=1 // pred_region
      %28 = vsyncadd [#allocation6], 0
      %s29 = sshll.u32 %s1, 4
      %s30 = int_to_ptr.hbm [resolvable:$true] %s29
      %s31 = sshll.u32 [#allocation5], 4
      %s32 = int_to_ptr.vmem [resolvable:$true] %s31
      %37 = dma.hbm_to_vmem [thread:$0]  %s30, 1024, %s32, [#allocation6], 64, 64, 4
    $region9: #{tpu_custom_call.1} parent=1 // pred_fallthru
      _
    // Predicated region
    $region10: #{tpu_custom_call.1} parent=1 // pred_check
      _
    $region11: #{tpu_custom_call.1} parent=1 // pred_check_branch
      %39 = sbr.rel (0) target = $region13
    $region12: #{tpu_custom_call.1} parent=1 // pred_region
      %41 = vsyncadd [#allocation6], 0
      %s42 = sshll.u32 %s2, 4
      %s43 = int_to_ptr.hbm [resolvable:$true] %s42
      %s44 = sshll.u32 [#allocation7], 4
      %s45 = int_to_ptr.vmem [resolvable:$true] %s44
      %50 = dma.hbm_to_vmem [thread:$0]  %s43, 2048, %s45, [#allocation6], 128, 128, 8
    $region13: #{tpu_custom_call.1} parent=1 // pred_fallthru
      _
    // Predicated region
    $region14: #{tpu_custom_call.1} parent=1 // pred_check
      _
    $region15: #{tpu_custom_call.1} parent=1 // pred_check_branch
      %52 = sbr.rel (0) target = $region17
    $region16: #{tpu_custom_call.1} parent=1 // pred_region
      _
    $region17: #{tpu_custom_call.1} parent=1 // pred_fallthru
      _
    // Predicated region
    $region18: #{tpu_custom_call.1} parent=1 // pred_check
      _
    $region19: #{tpu_custom_call.1} parent=1 // pred_check_branch
      %54 = sbr.rel (0) target = $region21
    $region20: #{tpu_custom_call.1} parent=1 // pred_region
      %56 = dma.done [#allocation3], 1024
    $region21: #{tpu_custom_call.1} parent=1 // pred_fallthru
      _
    // Predicated region
    $region22: #{tpu_custom_call.1} parent=1 // pred_check
      _
    $region23: #{tpu_custom_call.1} parent=1 // pred_check_branch
      %58 = sbr.rel (0) target = $region25
    $region24: #{tpu_custom_call.1} parent=1 // pred_region
      %60 = dma.done [#allocation6], 1024
    $region25: #{tpu_custom_call.1} parent=1 // pred_fallthru
      _
    // Predicated region
    $region26: #{tpu_custom_call.1} parent=1 // pred_check
      _
    $region27: #{tpu_custom_call.1} parent=1 // pred_check_branch
      %62 = sbr.rel (0) target = $region29
    $region28: #{tpu_custom_call.1} parent=1 // pred_region
      %64 = dma.done [#allocation6], 2048
    $region29: #{tpu_custom_call.1} parent=1 // pred_fallthru
      _
    %v65 = vld [vmem:[#allocation2] sm:$0xf]
    %v66 = vld [vmem:[#allocation2 + $0x4] sm:$0xf]
    %v67 = vld [vmem:[#allocation2 + $0x8] sm:$0xf]
    %v68 = vld [vmem:[#allocation2 + $0xc] sm:$0xf]
    %v69 = vld [vmem:[#allocation2 + $0x10] sm:$0xf]
    %v70 = vld [vmem:[#allocation2 + $0x14] sm:$0xf]
    %v71 = vld [vmem:[#allocation2 + $0x18] sm:$0xf]
    %v72 = vld [vmem:[#allocation2 + $0x1c] sm:$0xf]
    %v73 = vld [vmem:[#allocation2 + $0x20] sm:$0xf]
    %v74 = vld [vmem:[#allocation2 + $0x24] sm:$0xf]
    %v75 = vld [vmem:[#allocation2 + $0x28] sm:$0xf]
    %v76 = vld [vmem:[#allocation2 + $0x2c] sm:$0xf]
    %v77 = vld [vmem:[#allocation2 + $0x30] sm:$0xf]
    %v78 = vld [vmem:[#allocation2 + $0x34] sm:$0xf]
    %v79 = vld [vmem:[#allocation2 + $0x38] sm:$0xf]
    %v80 = vld [vmem:[#allocation2 + $0x3c] sm:$0xf]
    %v81 = vld [vmem:[#allocation5] sm:$0xf]
    %v82 = vld [vmem:[#allocation5 + $0x4] sm:$0xf]
    %v83 = vld [vmem:[#allocation5 + $0x8] sm:$0xf]
    %v84 = vld [vmem:[#allocation5 + $0xc] sm:$0xf]
    %v85 = vld [vmem:[#allocation5 + $0x10] sm:$0xf]
    %v86 = vld [vmem:[#allocation5 + $0x14] sm:$0xf]
    %v87 = vld [vmem:[#allocation5 + $0x18] sm:$0xf]
    %v88 = vld [vmem:[#allocation5 + $0x1c] sm:$0xf]
    %v89 = vld [vmem:[#allocation5 + $0x20] sm:$0xf]
    %v90 = vld [vmem:[#allocation5 + $0x24] sm:$0xf]
    %v91 = vld [vmem:[#allocation5 + $0x28] sm:$0xf]
    %v92 = vld [vmem:[#allocation5 + $0x2c] sm:$0xf]
    %v93 = vld [vmem:[#allocation5 + $0x30] sm:$0xf]
    %v94 = vld [vmem:[#allocation5 + $0x34] sm:$0xf]
    %v95 = vld [vmem:[#allocation5 + $0x38] sm:$0xf]
    %v96 = vld [vmem:[#allocation5 + $0x3c] sm:$0xf]
    %v113 = vunpack.c.l.b16 %v65
    %v114 = vunpack.c.l.b16 %v66
    %v115 = vunpack.c.l.b16 %v67
    %v116 = vunpack.c.l.b16 %v68
    %v117 = vunpack.c.l.b16 %v69
    %v118 = vunpack.c.l.b16 %v70
    %v119 = vunpack.c.l.b16 %v71
    %v120 = vunpack.c.l.b16 %v72
    %v121 = vunpack.c.l.b16 %v73
    %v122 = vunpack.c.l.b16 %v74
    %v123 = vunpack.c.l.b16 %v75
    %v124 = vunpack.c.l.b16 %v76
    %v125 = vunpack.c.l.b16 %v77
    %v126 = vunpack.c.l.b16 %v78
    %v127 = vunpack.c.l.b16 %v79
    %v128 = vunpack.c.l.b16 %v80
    %v129 = vpack.c.b16 %v114, %v113
    %v130 = vpack.c.b16 %v116, %v115
    %v131 = vpack.c.b16 %v118, %v117
    %v132 = vpack.c.b16 %v120, %v119
    %v133 = vpack.c.b16 %v122, %v121
    %v134 = vpack.c.b16 %v124, %v123
    %v135 = vpack.c.b16 %v126, %v125
    %v136 = vpack.c.b16 %v128, %v127
    %v161 = vunpack.c.l.b16 %v81
    %v162 = vunpack.c.l.b16 %v82
    %v163 = vunpack.c.l.b16 %v83
    %v164 = vunpack.c.l.b16 %v84
    %v165 = vunpack.c.l.b16 %v85
    %v166 = vunpack.c.l.b16 %v86
    %v167 = vunpack.c.l.b16 %v87
    %v168 = vunpack.c.l.b16 %v88
    %v169 = vunpack.c.l.b16 %v89
    %v170 = vunpack.c.l.b16 %v90
    %v171 = vunpack.c.l.b16 %v91
    %v172 = vunpack.c.l.b16 %v92
    %v173 = vunpack.c.l.b16 %v93
    %v174 = vunpack.c.l.b16 %v94
    %v175 = vunpack.c.l.b16 %v95
    %v176 = vunpack.c.l.b16 %v96
    %v177 = vpack.c.b16 %v162, %v161
    %v178 = vpack.c.b16 %v164, %v163
    %v179 = vpack.c.b16 %v166, %v165
    %v180 = vpack.c.b16 %v168, %v167
    %v181 = vpack.c.b16 %v170, %v169
    %v182 = vpack.c.b16 %v172, %v171
    %v183 = vpack.c.b16 %v174, %v173
    %v184 = vpack.c.b16 %v176, %v175
    %193 = vmatpush.bf16.msra.mxu0 %v184
    %194 = vmatpush.bf16.msra.mxu0 %v183
    %195 = vmatpush.bf16.msra.mxu0 %v182
    %196 = vmatpush.bf16.msra.mxu0 %v181
    %197 = vmatpush.bf16.msra.mxu0 %v180
    %198 = vmatpush.bf16.msra.mxu0 %v179
    %199 = vmatpush.bf16.msra.mxu0 %v178
    %200 = vmatpush.bf16.msra.mxu0 %v177
    %201 = vmatmul.bf16.gmra.mxu0 %v129
    %v202 = vpop.f32.mrf.mxu0
    %v203 = vadd.f32 0.0, %v202
    %v204 = vpop.f32.mrf.mxu0
    %v205 = vadd.f32 0.0, %v204
    %206 = vmatmul.bf16.gmra.mxu0 %v130
    %v207 = vpop.f32.mrf.mxu0
    %v208 = vadd.f32 0.0, %v207
    %v209 = vpop.f32.mrf.mxu0
    %v210 = vadd.f32 0.0, %v209
    %211 = vmatmul.bf16.gmra.mxu0 %v131
    %v212 = vpop.f32.mrf.mxu0
    %v213 = vadd.f32 0.0, %v212
    %v214 = vpop.f32.mrf.mxu0
    %v215 = vadd.f32 0.0, %v214
    %216 = vmatmul.bf16.gmra.mxu0 %v132
    %v217 = vpop.f32.mrf.mxu0
    %v218 = vadd.f32 0.0, %v217
    %v219 = vpop.f32.mrf.mxu0
    %v220 = vadd.f32 0.0, %v219
    %221 = vmatmul.bf16.gmra.mxu0 %v133
    %v222 = vpop.f32.mrf.mxu0
    %v223 = vadd.f32 0.0, %v222
    %v224 = vpop.f32.mrf.mxu0
    %v225 = vadd.f32 0.0, %v224
    %226 = vmatmul.bf16.gmra.mxu0 %v134
    %v227 = vpop.f32.mrf.mxu0
    %v228 = vadd.f32 0.0, %v227
    %v229 = vpop.f32.mrf.mxu0
    %v230 = vadd.f32 0.0, %v229
    %231 = vmatmul.bf16.gmra.mxu0 %v135
    %v232 = vpop.f32.mrf.mxu0
    %v233 = vadd.f32 0.0, %v232
    %v234 = vpop.f32.mrf.mxu0
    %v235 = vadd.f32 0.0, %v234
    %236 = vmatmul.bf16.gmra.mxu0 %v136
    %v237 = vpop.f32.mrf.mxu0
    %v238 = vadd.f32 0.0, %v237
    %v239 = vpop.f32.mrf.mxu0
    %v240 = vadd.f32 0.0, %v239
    %241 = vdwg.mxu0
    %v242 = vld [vmem:[#allocation7] sm:$0xff]
    %v243 = vld [vmem:[#allocation7 + $0x8] sm:$0xff]
    %v244 = vld [vmem:[#allocation7 + $0x10] sm:$0xff]
    %v245 = vld [vmem:[#allocation7 + $0x18] sm:$0xff]
    %v246 = vld [vmem:[#allocation7 + $0x20] sm:$0xff]
    %v247 = vld [vmem:[#allocation7 + $0x28] sm:$0xff]
    %v248 = vld [vmem:[#allocation7 + $0x30] sm:$0xff]
    %v249 = vld [vmem:[#allocation7 + $0x38] sm:$0xff]
    %v250 = vld [vmem:[#allocation7 + $0x40] sm:$0xff]
    %v251 = vld [vmem:[#allocation7 + $0x48] sm:$0xff]
    %v252 = vld [vmem:[#allocation7 + $0x50] sm:$0xff]
    %v253 = vld [vmem:[#allocation7 + $0x58] sm:$0xff]
    %v254 = vld [vmem:[#allocation7 + $0x60] sm:$0xff]
    %v255 = vld [vmem:[#allocation7 + $0x68] sm:$0xff]
    %v256 = vld [vmem:[#allocation7 + $0x70] sm:$0xff]
    %v257 = vld [vmem:[#allocation7 + $0x78] sm:$0xff]
    %v258 = vld [vmem:[%s3] sm:$0x1]
    %v260 = vperm.slane %v258, 0
    %262 = vmatpush.msra.mxu0 %v257
    %263 = vmatpush.msra.mxu0 %v256
    %264 = vmatpush.msra.mxu0 %v255
    %265 = vmatpush.msra.mxu0 %v254
    %266 = vmatpush.msra.mxu0 %v253
    %267 = vmatpush.msra.mxu0 %v252
    %268 = vmatpush.msra.mxu0 %v251
    %269 = vmatpush.msra.mxu0 %v250
    %270 = vmatpush.msra.mxu0 %v249
    %271 = vmatpush.msra.mxu0 %v248
    %272 = vmatpush.msra.mxu0 %v247
    %273 = vmatpush.msra.mxu0 %v246
    %274 = vmatpush.msra.mxu0 %v245
    %275 = vmatpush.msra.mxu0 %v244
    %276 = vmatpush.msra.mxu0 %v243
    %277 = vmatpush.msra.mxu0 %v242
    %278 = vmatmul.f32.gmra.mxu0 %v203
    %v279 = vpop.f32.mrf.mxu0
    %v280 = vadd.f32 %v260, %v279
    %281 = vmatmul.f32.gmra.mxu0 %v205
    %v282 = vpop.f32.mrf.mxu0
    %v283 = vadd.f32 %v260, %v282
    %284 = vmatmul.f32.gmra.mxu0 %v208
    %v285 = vpop.f32.mrf.mxu0
    %v286 = vadd.f32 %v260, %v285
    %287 = vmatmul.f32.gmra.mxu0 %v210
    %v288 = vpop.f32.mrf.mxu0
    %v289 = vadd.f32 %v260, %v288
    %290 = vmatmul.f32.gmra.mxu0 %v213
    %v291 = vpop.f32.mrf.mxu0
    %v292 = vadd.f32 %v260, %v291
    %293 = vmatmul.f32.gmra.mxu0 %v215
    %v294 = vpop.f32.mrf.mxu0
    %v295 = vadd.f32 %v260, %v294
    %296 = vmatmul.f32.gmra.mxu0 %v218
    %v297 = vpop.f32.mrf.mxu0
    %v298 = vadd.f32 %v260, %v297
    %299 = vmatmul.f32.gmra.mxu0 %v220
    %v300 = vpop.f32.mrf.mxu0
    %v301 = vadd.f32 %v260, %v300
    %302 = vmatmul.f32.gmra.mxu0 %v223
    %v303 = vpop.f32.mrf.mxu0
    %v304 = vadd.f32 %v260, %v303
    %305 = vmatmul.f32.gmra.mxu0 %v225
    %v306 = vpop.f32.mrf.mxu0
    %v307 = vadd.f32 %v260, %v306
    %308 = vmatmul.f32.gmra.mxu0 %v228
    %v309 = vpop.f32.mrf.mxu0
    %v310 = vadd.f32 %v260, %v309
    %311 = vmatmul.f32.gmra.mxu0 %v230
    %v312 = vpop.f32.mrf.mxu0
    %v313 = vadd.f32 %v260, %v312
    %314 = vmatmul.f32.gmra.mxu0 %v233
    %v315 = vpop.f32.mrf.mxu0
    %v316 = vadd.f32 %v260, %v315
    %317 = vmatmul.f32.gmra.mxu0 %v235
    %v318 = vpop.f32.mrf.mxu0
    %v319 = vadd.f32 %v260, %v318
    %320 = vmatmul.f32.gmra.mxu0 %v238
    %v321 = vpop.f32.mrf.mxu0
    %v322 = vadd.f32 %v260, %v321
    %323 = vmatmul.f32.gmra.mxu0 %v240
    %v324 = vpop.f32.mrf.mxu0
    %v325 = vadd.f32 %v260, %v324
    %326 = vdwg.mxu0
    %vm327 = vcmp.gt.f32.partialorder %v280, 0.0
    %vm328 = vcmp.gt.f32.partialorder %v283, 0.0
    %vm329 = vcmp.gt.f32.partialorder %v286, 0.0
    %vm330 = vcmp.gt.f32.partialorder %v289, 0.0
    %vm331 = vcmp.gt.f32.partialorder %v292, 0.0
    %vm332 = vcmp.gt.f32.partialorder %v295, 0.0
    %vm333 = vcmp.gt.f32.partialorder %v298, 0.0
    %vm334 = vcmp.gt.f32.partialorder %v301, 0.0
    %vm335 = vcmp.gt.f32.partialorder %v304, 0.0
    %vm336 = vcmp.gt.f32.partialorder %v307, 0.0
    %vm337 = vcmp.gt.f32.partialorder %v310, 0.0
    %vm338 = vcmp.gt.f32.partialorder %v313, 0.0
    %vm339 = vcmp.gt.f32.partialorder %v316, 0.0
    %vm340 = vcmp.gt.f32.partialorder %v319, 0.0
    %vm341 = vcmp.gt.f32.partialorder %v322, 0.0
    %vm342 = vcmp.gt.f32.partialorder %v325, 0.0
    %v343 = vmul.f32 %v280, 1.442695
    %v344 = vpow.pop %v343
    %v345 = vmul.f32 %v283, 1.442695
    %v346 = vpow.pop %v345
    %v347 = vmul.f32 %v286, 1.442695
    %v348 = vpow.pop %v347
    %v349 = vmul.f32 %v289, 1.442695
    %v350 = vpow.pop %v349
    %v351 = vmul.f32 %v292, 1.442695
    %v352 = vpow.pop %v351
    %v353 = vmul.f32 %v295, 1.442695
    %v354 = vpow.pop %v353
    %v355 = vmul.f32 %v298, 1.442695
    %v356 = vpow.pop %v355
    %v357 = vmul.f32 %v301, 1.442695
    %v358 = vpow.pop %v357
    %v359 = vmul.f32 %v304, 1.442695
    %v360 = vpow.pop %v359
    %v361 = vmul.f32 %v307, 1.442695
    %v362 = vpow.pop %v361
    %v363 = vmul.f32 %v310, 1.442695
    %v364 = vpow.pop %v363
    %v365 = vmul.f32 %v313, 1.442695
    %v366 = vpow.pop %v365
    %v367 = vmul.f32 %v316, 1.442695
    %v368 = vpow.pop %v367
    %v369 = vmul.f32 %v319, 1.442695
    %v370 = vpow.pop %v369
    %v371 = vmul.f32 %v322, 1.442695
    %v372 = vpow.pop %v371
    %v373 = vmul.f32 %v325, 1.442695
    %v374 = vpow.pop %v373
    %v375 = vsub.f32 %v344, 1.0
    %v376 = vsub.f32 %v346, 1.0
    %v377 = vsub.f32 %v348, 1.0
    %v378 = vsub.f32 %v350, 1.0
    %v379 = vsub.f32 %v352, 1.0
    %v380 = vsub.f32 %v354, 1.0
    %v381 = vsub.f32 %v356, 1.0
    %v382 = vsub.f32 %v358, 1.0
    %v383 = vsub.f32 %v360, 1.0
    %v384 = vsub.f32 %v362, 1.0
    %v385 = vsub.f32 %v364, 1.0
    %v386 = vsub.f32 %v366, 1.0
    %v387 = vsub.f32 %v368, 1.0
    %v388 = vsub.f32 %v370, 1.0
    %v389 = vsub.f32 %v372, 1.0
    %v390 = vsub.f32 %v374, 1.0
    %v391 = vsel %vm327, %v280, %v375
    %v392 = vsel %vm328, %v283, %v376
    %v393 = vsel %vm329, %v286, %v377
    %v394 = vsel %vm330, %v289, %v378
    %v395 = vsel %vm331, %v292, %v379
    %v396 = vsel %vm332, %v295, %v380
    %v397 = vsel %vm333, %v298, %v381
    %v398 = vsel %vm334, %v301, %v382
    %v399 = vsel %vm335, %v304, %v383
    %v400 = vsel %vm336, %v307, %v384
    %v401 = vsel %vm337, %v310, %v385
    %v402 = vsel %vm338, %v313, %v386
    %v403 = vsel %vm339, %v316, %v387
    %v404 = vsel %vm340, %v319, %v388
    %v405 = vsel %vm341, %v322, %v389
    %v406 = vsel %vm342, %v325, %v390
    %407 = vst [vmem:[#allocation8] sm:$0xff] %v391
    %408 = vst [vmem:[#allocation8 + $0x8] sm:$0xff] %v392
    %409 = vst [vmem:[#allocation8 + $0x10] sm:$0xff] %v393
    %410 = vst [vmem:[#allocation8 + $0x18] sm:$0xff] %v394
    %411 = vst [vmem:[#allocation8 + $0x20] sm:$0xff] %v395
    %412 = vst [vmem:[#allocation8 + $0x28] sm:$0xff] %v396
    %413 = vst [vmem:[#allocation8 + $0x30] sm:$0xff] %v397
    %414 = vst [vmem:[#allocation8 + $0x38] sm:$0xff] %v398
    %415 = vst [vmem:[#allocation8 + $0x40] sm:$0xff] %v399
    %416 = vst [vmem:[#allocation8 + $0x48] sm:$0xff] %v400
    %417 = vst [vmem:[#allocation8 + $0x50] sm:$0xff] %v401
    %418 = vst [vmem:[#allocation8 + $0x58] sm:$0xff] %v402
    %419 = vst [vmem:[#allocation8 + $0x60] sm:$0xff] %v403
    %420 = vst [vmem:[#allocation8 + $0x68] sm:$0xff] %v404
    %421 = vst [vmem:[#allocation8 + $0x70] sm:$0xff] %v405
    %422 = vst [vmem:[#allocation8 + $0x78] sm:$0xff] %v406
    // Predicated region
    $region30: #{tpu_custom_call.1} parent=1 // pred_check
      _
    $region31: #{tpu_custom_call.1} parent=1 // pred_check_branch
      %424 = sbr.rel (0) target = $region33
    $region32: #{tpu_custom_call.1} parent=1 // pred_region
      %426 = vsyncadd [#allocation4], 0
      %s427 = sshll.u32 [#allocation8], 4
      %s428 = int_to_ptr.vmem [resolvable:$true] %s427
      %s429 = sshll.u32 %s4, 4
      %s430 = int_to_ptr.hbm [resolvable:$true] %s429
      %435 = dma.vmem_to_hbm [thread:$0]  %s428, 2048, %s430, [#allocation4], 128, 128, 8
    $region33: #{tpu_custom_call.1} parent=1 // pred_fallthru
      _
    // Predicated region
    $region34: #{tpu_custom_call.1} parent=1 // pred_check
      _
    $region35: #{tpu_custom_call.1} parent=1 // pred_check_branch
      %437 = sbr.rel (0) target = $region37
    $region36: #{tpu_custom_call.1} parent=1 // pred_region
      %439 = dma.done [#allocation4], 2048
    $region37: #{tpu_custom_call.1} parent=1 // pred_fallthru
      _
    %440 = vsyncpa [#allocation3], 1
    %441 = vsyncpa [#allocation6], 1
    %442 = vsyncpa [#allocation4], 1

</llo_original>
